<compile_context>
chip_gen: v7x
topology: tpu7x:2x2x1
jax: 0.10.0
libtpu: 0.0.40
codegen_flags: <defaults>
</compile_context>

<pallas_src>
import functools

import jax
import jax.numpy as jnp
from jax import lax
from jax.experimental import pallas as pl
from jax.experimental.pallas import tpu as pltpu


def _structural_probe_kernel(x_ref, proj_ref, out_ref, *, use_vpu_distances):
    # x_ref:    (TB, S, D)   block of sentences
    # proj_ref: (D, R)       full projection matrix (grid-invariant, VMEM-resident)
    # out_ref:  (1, TB, S*S) lane-dense flattened block, or (TB, S, S) when S
    #           is already a multiple of 128 (reshape below is then a no-op).
    TB, S, D = x_ref.shape

    # Projection: direct 3-D contraction over D (no reshape -> no relayout when
    # S is not a multiple of 8).  f32 accumulation on the MXU.  -> (TB, S, R)
    t = lax.dot_general(
        x_ref[...], proj_ref[...],
        dimension_numbers=(((2,), (0,)), ((), ())),
        preferred_element_type=jnp.float32)

    if use_vpu_distances:
        # Small S: pairwise distances directly on the VPU.  Exact (diagonal is
        # exactly 0) and avoids TB tiny (S x S x R) MXU pushes.
        diffs = t[:, :, None, :] - t[:, None, :, :]            # (TB, S, S, R)
        dist = jnp.sum(diffs * diffs, axis=-1)                 # (TB, S, S)
    else:
        # Larger S: Gram-matrix identity on the MXU (batched over TB,
        # contracting R on both operands -- no explicit transpose of t).
        gram = lax.dot_general(                                # (TB, S, S)
            t, t,
            dimension_numbers=(((2,), (2,)), ((0,), (0,))),
            preferred_element_type=jnp.float32)
        sq_i = jnp.sum(t * t, axis=-1, keepdims=True)          # (TB, S, 1)
        sq_j = jnp.swapaxes(sq_i, 1, 2)                        # (TB, 1, S) (XLU)
        # Clamp tiny negative round-off; diagonal is >= 0 but not exactly 0.
        dist = jnp.maximum(sq_i + sq_j - 2.0 * gram, 0.0)

    out_ref[...] = dist.reshape(out_ref.shape).astype(out_ref.dtype)


def _choose_block_b(B, S, D, R, use_vpu, budget_bytes):
    """Byte-based block size: double-buffered in/out blocks + in-kernel temps."""
    per = 2 * S * D * 4          # input block, double-buffered
    per += 2 * S * S * 4         # output block, double-buffered
    per += S * R * 4             # projected t
    if use_vpu:
        per += S * S * R * 4     # diffs temporary
        per += S * S * 4         # dist
    else:
        per += 3 * S * S * 4     # gram + dist + slack
    block_b = max(1, budget_bytes // per)
    block_b = min(block_b, B)
    if B >= 2:
        # Keep >= 2 grid blocks so the "parallel" axis can shard across the two
        # v7x TensorCores (no-op cost on single-core v5e/v6e).
        block_b = min(block_b, pl.cdiv(B, 2))
    return max(1, int(block_b)), per


def structural_probe(batch, proj, *, block_b=None, use_pallas=None):
    """batch: (B, S, D) f32, proj: (D, R) f32 -> (B, S, S) f32 (PyTorch semantics)."""
    B, S, D = batch.shape
    Dp, R = proj.shape
    assert D == Dp

    # Small-problem fast path: pallas_call fixed cost (DMA setup, grid
    # prologue, stores) dwarfs the compute -- let XLA fuse the plain form.
    if use_pallas is None:
        use_pallas = (B * S * D) >= (64 * 1024)
    if not use_pallas:
        return structural_probe_ref(batch, proj)

    # Below this, per-sentence MXU pushes for the Gram matrix are pure overhead.
    use_vpu = S <= 32

    budget = 8 * 2**20
    auto_block_b, per_sentence = _choose_block_b(B, S, D, R, use_vpu, budget)
    if block_b is None:
        block_b = auto_block_b
    block_b = max(1, min(int(block_b), B))

    num_blocks = pl.cdiv(B, block_b)
    Bp = num_blocks * block_b
    if Bp != B:
        # Padded all-zero sentences produce all-zero distances; sliced off below.
        batch = jnp.pad(batch, ((0, Bp - B), (0, 0), (0, 0)))

    # proj is grid-invariant; single-buffer it when a second pipeline buffer
    # would be a meaningful VMEM waste (e.g. 4096x1024 f32 = 16 MiB).
    proj_bytes = D * R * 4
    proj_kwargs = {}
    if proj_bytes >= 2 * 2**20:
        proj_kwargs["pipeline_mode"] = pl.Buffered(1)
    proj_spec = pl.BlockSpec((D, R), lambda b: (0, 0), **proj_kwargs)

    lane_dense_native = (S % 128 == 0)
    if lane_dense_native:
        # (B, S, S) is already lane-dense; avoid any in-kernel relayout.
        out_shape = jax.ShapeDtypeStruct((Bp, S, S), jnp.float32)
        out_spec = pl.BlockSpec((block_b, S, S), lambda b: (b, 0, 0))
    else:
        # Lane-dense flattened slab: last dim S*S across lanes, block_b
        # sentences across sublanes; one contiguous DMA per grid step.
        out_shape = jax.ShapeDtypeStruct((num_blocks, block_b, S * S), jnp.float32)
        out_spec = pl.BlockSpec((1, block_b, S * S), lambda b: (b, 0, 0))

    # Explicit scoped-VMEM limit derived from the footprint (v5e scoped default
    # is 16 MiB; v7x physical VMEM is 64 MiB -- stay within it).
    est = block_b * per_sentence + 2 * proj_bytes
    vmem_limit = int(min(64 * 2**20, max(32 * 2**20, 2 * est)))

    kernel = functools.partial(_structural_probe_kernel,
                               use_vpu_distances=use_vpu)

    out = pl.pallas_call(
        kernel,
        out_shape=out_shape,
        grid_spec=pltpu.PrefetchScalarGridSpec(
            num_scalar_prefetch=0,
            grid=(num_blocks,),
            in_specs=[
                pl.BlockSpec((block_b, S, D), lambda b: (b, 0, 0)),
                proj_spec,
            ],
            out_specs=out_spec,
        ),
        compiler_params=pltpu.CompilerParams(
            dimension_semantics=("parallel",),
            vmem_limit_bytes=vmem_limit,
        ),
    )(batch, proj)

    out = out.reshape(Bp, S, S)
    if Bp != B:
        out = out[:B]
    return out


def structural_probe_ref(batch, proj):
    """Pure-JAX reference, mirroring the PyTorch forward exactly."""
    t = jnp.matmul(batch, proj)                    # (B, S, R)
    diffs = t[:, :, None, :] - t[:, None, :, :]    # (B, S, S, R)
    return jnp.sum(diffs ** 2, axis=-1)            # (B, S, S)


if __name__ == "__main__":
    # Shapes consistent with the module: batch_size=2, max_seq_len=8,
    # model_dim=32, probe_rank=16.
    B, S, D, R = 2, 8, 32, 16
    key = jax.random.PRNGKey(0)
    k_x, k_p, k_x2, k_x3 = jax.random.split(key, 4)

    batch = jax.random.normal(k_x, (B, S, D), dtype=jnp.float32)
    # Matches nn.init.uniform_(proj, -0.05, 0.05).
    proj = jax.random.uniform(k_p, (D, R), minval=-0.05, maxval=0.05,
                              dtype=jnp.float32)

    # 1) Small-S (VPU-distance) path, forced through the Pallas kernel.
    out = jax.block_until_ready(structural_probe(batch, proj, use_pallas=True))
    ref = structural_probe_ref(batch, proj)
    assert out.shape == (B, S, S)
    assert jnp.allclose(out, ref, atol=1e-5, rtol=1e-4)

    # 2) Non-divisible batch (padding path) with an explicit block size.
    B2 = 3
    batch2 = jax.random.normal(k_x2, (B2, S, D), dtype=jnp.float32)
    out2 = jax.block_until_ready(
        structural_probe(batch2, proj, block_b=2, use_pallas=True))
    ref2 = structural_probe_ref(batch2, proj)
    assert out2.shape == (B2, S, S)
    assert jnp.allclose(out2, ref2, atol=1e-5, rtol=1e-4)

    # 3) Larger-S (Gram / MXU) path, still small shapes.
    B3, S3, D3, R3 = 3, 48, 64, 32
    batch3 = jax.random.normal(k_x3, (B3, S3, D3), dtype=jnp.float32)
    proj3 = jax.random.uniform(jax.random.PRNGKey(1), (D3, R3),
                               minval=-0.05, maxval=0.05, dtype=jnp.float32)
    out3 = jax.block_until_ready(structural_probe(batch3, proj3, use_pallas=True))
    ref3 = structural_probe_ref(batch3, proj3)
    assert out3.shape == (B3, S3, S3)
    assert jnp.allclose(out3, ref3, atol=1e-5, rtol=1e-4)

    # 4) Auto path selection: tiny problem falls back to the fused JAX path.
    out4 = jax.block_until_ready(structural_probe(batch, proj))
    assert jnp.allclose(out4, ref, atol=1e-6, rtol=1e-6)

    print("KERNEL_OK")
</pallas_src>

<mosaic_0001>
module attributes {stable_mosaic.version = 11 : i64} {
  func.func @_structural_probe_kernel(%arg0: i32, %arg1: memref<1x8x32xf32, #tpu.memory_space<vmem>>, %arg2: memref<32x16xf32, #tpu.memory_space<vmem>>, %arg3: memref<1x1x64xf32, #tpu.memory_space<vmem>>) attributes {dimension_semantics = [#tpu.dimension_semantics<parallel>], iteration_bounds = array<i64: 2>, scalar_prefetch = 0 : i64, scratch_operands = 0 : i64, tpu.core_type = #tpu.core_type<tc>, window_params = [{transform_indices = @transform_0, window_bounds = array<i64: 1, 8, 32>}, {pipeline_mode = #tpu.pipeline_mode<synchronous>, transform_indices = @transform_1, window_bounds = array<i64: 32, 16>}, {transform_indices = @transform_2, window_bounds = array<i64: 1, 1, 64>}]} {
    %c0 = arith.constant 0 : index
    %c0_0 = arith.constant 0 : index
    %c0_1 = arith.constant 0 : index
    %0 = vector.load %arg1[%c0, %c0_0, %c0_1] : memref<1x8x32xf32, #tpu.memory_space<vmem>>, vector<1x8x32xf32>
    %c0_2 = arith.constant 0 : index
    %c0_3 = arith.constant 0 : index
    %1 = vector.load %arg2[%c0_2, %c0_3] : memref<32x16xf32, #tpu.memory_space<vmem>>, vector<32x16xf32>
    %cst = arith.constant dense<0.000000e+00> : vector<1x8x16xf32>
    %2 = tpu.matmul %0, %1, %cst {dimension_numbers = #tpu.dot_dimension_numbers<[2], [0], [0, 1], [1], [0, 0, 0, 1, 1, 1], [], []>} : vector<1x8x32xf32>, vector<32x16xf32>, vector<1x8x16xf32> -> vector<1x8x16xf32>
    %3 = vector.shape_cast %2 : vector<1x8x16xf32> to vector<1x8x1x16xf32>
    %4 = vector.shape_cast %2 : vector<1x8x16xf32> to vector<1x1x8x16xf32>
    %5 = vector.broadcast %3 : vector<1x8x1x16xf32> to vector<1x8x8x16xf32>
    %6 = vector.broadcast %4 : vector<1x1x8x16xf32> to vector<1x8x8x16xf32>
    %7 = arith.subf %5, %6 : vector<1x8x8x16xf32>
    %8 = arith.mulf %7, %7 : vector<1x8x8x16xf32>
    %cst_4 = arith.constant dense<0.000000e+00> : vector<1x8x8xf32>
    %9 = vector.multi_reduction <add>, %8, %cst_4 [3] : vector<1x8x8x16xf32> to vector<1x8x8xf32>
    %10 = vector.shape_cast %9 : vector<1x8x8xf32> to vector<1x1x64xf32>
    %c0_5 = arith.constant 0 : index
    %c0_6 = arith.constant 0 : index
    %c0_7 = arith.constant 0 : index
    %11 = vector.load %arg3[%c0_5, %c0_6, %c0_7] : memref<1x1x64xf32, #tpu.memory_space<vmem>>, vector<1x1x64xf32>
    tpu.vector_store %arg3[%c0_5, %c0_6, %c0_7], %10 {strides = array<i32>} : memref<1x1x64xf32, #tpu.memory_space<vmem>>, vector<1x1x64xf32>,
    return
  }
  func.func @transform_0(%arg0: i32) -> (i32, i32, i32) {
    %c0_i32 = arith.constant 0 : i32
    %c0_i32_0 = arith.constant 0 : i32
    %c0_i32_1 = arith.constant 0 : i32
    return %arg0, %c0_i32, %c0_i32_0 : i32, i32, i32
  }
  func.func @transform_1(%arg0: i32) -> (i32, i32) {
    %c0_i32 = arith.constant 0 : i32
    %c0_i32_0 = arith.constant 0 : i32
    %c0_i32_1 = arith.constant 0 : i32
    return %c0_i32, %c0_i32_0 : i32, i32
  }
  func.func @transform_2(%arg0: i32) -> (i32, i32, i32) {
    %c0_i32 = arith.constant 0 : i32
    %c0_i32_0 = arith.constant 0 : i32
    %c0_i32_1 = arith.constant 0 : i32
    return %arg0, %c0_i32, %c0_i32_0 : i32, i32, i32
  }
}

</mosaic_0001>

<llo_original>
// kernel: tpu_custom_call.1
$region0: #{tpu_custom_call.1}
  #allocation0 [shape = 'u32[]', space=smem, size = 0x4, offset = 0x4, fixed_abs, tag = 'smem constant byte address 0x4 - core index']
  #allocation1 [shape = 'u32[144,128]{1,0:T(1,128)}', space=vmem, size = 0x12000, scoped, tag = 'internal scratch']
  %s0 = inlined_call_operand.vmem [shape: f32[2,8,32], index: 0, kind: input, shape index: {}]
  %s1 = inlined_call_operand.vmem [shape: f32[32,16], index: 1, kind: input, shape index: {}]
  %s2 = inlined_call_operand.hbm [shape: f32[2,1,64], index: 2, kind: output, shape index: {}]
  %s3 = sld [smem:[#allocation0]]
  $region41: #{tpu_custom_call.1} parent=0
    _
  %s5 = ssub.s32 1, %s3
  %s6 = scalar_select 0, %s5, %s3
  $region1: #{tpu_custom_call.1} parent=0
    #allocation2 [shape = 'u8[1024]{0}', space=vmem, size = 0x400, scoped, tag = 'output window, operand 0']
    #allocation3 [shape = 's32[2]{0}', space=sflag, size = 0x8, scoped, tag = 'scoped memory for tpu_custom_call.1']
    %7 = vsyncpa [#allocation3], 0
    %s8 = scalar_lea.sflag [#allocation3], 1
    %9 = vsyncpa %s8, 0
    loop: start=0, step=1, limit=4
    $region2: #{tpu_custom_call.1} parent=1 // loop_pre_header
      _
    $region3: #{tpu_custom_call.1} parent=1 // loop_header
      %s11 = sphi 0, %s15
      %p12 = scmp.ge.s32.totalorder %s11, 4
      %s21 = sphi 0, %s23
      %s24 = sphi 0, %s21
      %s25 = sphi 0, %s24
      %s41 = sphi 0, %s25
      %s45 = sphi 0, %s45
      %s47 = sphi 0, %s45
      %s48 = sphi 0, %s47
      %s62 = sphi 0, %s48
      %s68 = sphi 0, %s70
      %s71 = sphi 0, %s68
      %s72 = sphi 0, %s71
      %s88 = sphi 0, %s72
    $region4: #{tpu_custom_call.1} parent=1 // loop_header_branch
      %14 = sbr.rel (%p12) target = $region8
    $region5: #{tpu_custom_call.1} parent=1 // loop_body
      %s16 = ssub.s32 %s11, 1
      %s17 = ssub.s32 %s11, 2
      %s18 = sadd.s32 %s11, 1
      %s19 = ssub.s32 %s11, %s18
      %p20 = scmp.eq.s32.totalorder %s19, 0
      %s22 = sadd.s32 %s21, 1
      %s23 = scalar_select %p20, %s21, %s22
      %p26 = pneg %p20
      %p27 = scmp.eq.s32.totalorder %s11, 1
      %p28 = por %p26, %p27
      %p29 = scmp.ne.s32.totalorder %s21, %s24
      %p30 = scmp.eq.s32.totalorder %s11, 0
      %p31 = por %p29, %p30
      %p32 = scmp.ne.s32.totalorder %s21, %s24
      %p33 = scmp.eq.s32.totalorder %s16, 1
      %p34 = por %p32, %p33
      %p35 = scmp.ne.s32.totalorder %s24, %s25
      %p36 = scmp.eq.s32.totalorder %s16, 0
      %p37 = por %p35, %p36
      %p38 = scmp.ne.s32.totalorder %s24, %s25
      %p39 = scmp.eq.s32.totalorder %s17, 1
      %p40 = por %p38, %p39
      %p42 = scmp.ne.s32.totalorder %s25, %s41
      %p43 = scmp.eq.s32.totalorder %s17, 0
      %p44 = por %p42, %p43
      %s46 = sadd.s32 %s45, 1
      %p49 = scmp.eq.s32.totalorder %s11, 1
      %p50 = scmp.ne.s32.totalorder %s45, %s47
      %p51 = scmp.eq.s32.totalorder %s11, 0
      %p52 = por %p50, %p51
      %p53 = scmp.ne.s32.totalorder %s45, %s47
      %p54 = scmp.eq.s32.totalorder %s16, 1
      %p55 = por %p53, %p54
      %p56 = scmp.ne.s32.totalorder %s47, %s48
      %p57 = scmp.eq.s32.totalorder %s16, 0
      %p58 = por %p56, %p57
      %p59 = scmp.ne.s32.totalorder %s47, %s48
      %p60 = scmp.eq.s32.totalorder %s17, 1
      %p61 = por %p59, %p60
      %p63 = scmp.ne.s32.totalorder %s48, %s62
      %p64 = scmp.eq.s32.totalorder %s17, 0
      %p65 = por %p63, %p64
      %s66 = ssub.s32 %s11, %s18
      %p67 = scmp.eq.s32.totalorder %s66, 0
      %s69 = sadd.s32 %s68, 1
      %s70 = scalar_select %p67, %s68, %s69
      %p73 = pneg %p67
      %p74 = scmp.eq.s32.totalorder %s11, 1
      %p75 = por %p73, %p74
      %p76 = scmp.ne.s32.totalorder %s68, %s71
      %p77 = scmp.eq.s32.totalorder %s11, 0
      %p78 = por %p76, %p77
      %p79 = scmp.ne.s32.totalorder %s68, %s71
      %p80 = scmp.eq.s32.totalorder %s16, 1
      %p81 = por %p79, %p80
      %p82 = scmp.ne.s32.totalorder %s71, %s72
      %p83 = scmp.eq.s32.totalorder %s16, 0
      %p84 = por %p82, %p83
      %p85 = scmp.ne.s32.totalorder %s71, %s72
      %p86 = scmp.eq.s32.totalorder %s17, 1
      %p87 = por %p85, %p86
      %p89 = scmp.ne.s32.totalorder %s72, %s88
      %p90 = scmp.eq.s32.totalorder %s17, 0
      %p91 = por %p89, %p90
      %p92 = scmp.le.s32.totalorder 1, %s11
      %p93 = scmp.lt.s32.totalorder %s11, 3
      %p94 = pnand %p92, %p93
      %p95 = pneg %p94
      // Predicated region
      $region9: #{tpu_custom_call.1} parent=5 // pred_check
        _
      $region10: #{tpu_custom_call.1} parent=5 // pred_check_branch
        %97 = sbr.rel (%p94) target = $region12
      $region11: #{tpu_custom_call.1} parent=5 // pred_region
        %s98 = ssub.s32 %s11, 1
        // Predicated region
        $region13: #{tpu_custom_call.1} parent=11 // pred_check
          %p99 = pneg %p58
        $region14: #{tpu_custom_call.1} parent=11 // pred_check_branch
          %101 = sbr.rel (%p99) target = $region16
        $region15: #{tpu_custom_call.1} parent=11 // pred_region
          _
        $region16: #{tpu_custom_call.1} parent=11 // pred_fallthru
          _
      $region12: #{tpu_custom_call.1} parent=5 // pred_fallthru
        _
      %p102 = scmp.lt.s32.totalorder %s11, 2
      // Predicated region
      $region17: #{tpu_custom_call.1} parent=5 // pred_check
        %p103 = pneg %p102
      $region18: #{tpu_custom_call.1} parent=5 // pred_check_branch
        %105 = sbr.rel (%p103) target = $region20
      $region19: #{tpu_custom_call.1} parent=5 // pred_region
        // Predicated region
        $region21: #{tpu_custom_call.1} parent=19 // pred_check
          %p106 = pneg %p31
        $region22: #{tpu_custom_call.1} parent=19 // pred_check_branch
          %108 = sbr.rel (%p106) target = $region24
        $region23: #{tpu_custom_call.1} parent=19 // pred_region
          %p109 = scmp.lt.s32.totalorder %s11, 1
          %s110 = scalar_select %p109, %s11, 1
          %s111 = smul.addr %s110, 8
          %s112 = scalar_lea.vmem %s0, %s111
        $region24: #{tpu_custom_call.1} parent=19 // pred_fallthru
          _
      $region20: #{tpu_custom_call.1} parent=5 // pred_fallthru
        _
      %p113 = scmp.le.s32.totalorder 1, %s11
      %p114 = scmp.lt.s32.totalorder %s11, 3
      %p115 = pnand %p113, %p114
      %p116 = pneg %p115
      // Predicated region
      $region25: #{tpu_custom_call.1} parent=5 // pred_check
        _
      $region26: #{tpu_custom_call.1} parent=5 // pred_check_branch
        %118 = sbr.rel (%p115) target = $region28
      $region27: #{tpu_custom_call.1} parent=5 // pred_region
        %s119 = ssub.s32 %s11, 1
        %p120 = scmp.lt.s32.totalorder %s16, 1
        %s121 = scalar_select %p120, %s16, 1
        %s122 = smul.addr %s121, 8
        %s123 = scalar_lea.vmem %s0, %s122
        %p124 = pneg %p37
        %p125 = pneg %p34
        %p126 = pneg %p58
        %p127 = pneg %p55
        %p128 = pneg %p84
        %p129 = pneg %p81
        %s130 = sand.u32 %s71, 1
        %s131 = scalar_lea.sflag [#allocation3], %s130
        %s132 = sand.u32 %s71, 1
        %s133 = scalar_lea.vmem [#allocation2], %s132
        %p134 = scmp.lt.s32.totalorder %s16, 1
        %s135 = scalar_select %p134, %s16, 1
        %s136 = smul.addr %s135, 8
        %s137 = scalar_lea.vmem %s0, %s136
        %v138 = vld [vmem:[%s137] sm:$0xff]
        %v139 = vld [vmem:[%s1] sm:$0xff]
        %v140 = vld [vmem:[%s1 + $0x8] sm:$0xff]
        %v141 = vld [vmem:[%s1 + $0x10] sm:$0xff]
        %v142 = vld [vmem:[%s1 + $0x18] sm:$0xff]
        %vm143 = vcmask 261120
        %v145 = vsel %vm143, %v138, 0
        %147 = vmatprep.subr.mxu0 0.0
        %148 = vmatpush1.msra.mxu0 %v139
        %149 = vmatprep.subr.mxu0 0.0
        %150 = vmatpush1.msra.mxu0 %v140
        %151 = vmatprep.subr.mxu0 0.0
        %152 = vmatpush1.msra.mxu0 %v141
        %153 = vmatprep.subr.mxu0 0.0
        %154 = vmatpush1.msra.mxu0 %v142
        %155 = vmatprep.subr.mxu0 0.0
        %156 = vmatpush1.msra.mxu0 0.0
        %157 = vmatprep.subr.mxu0 0.0
        %158 = vmatpush1.msra.mxu0 0.0
        %159 = vmatprep.subr.mxu0 0.0
        %160 = vmatpush1.msra.mxu0 0.0
        %161 = vmatprep.subr.mxu0 0.0
        %162 = vmatpush1.msra.mxu0 0.0
        %163 = vmatprep.subr.mxu0 0.0
        %164 = vmatpush1.msra.mxu0 0.0
        %165 = vmatprep.subr.mxu0 0.0
        %166 = vmatpush1.msra.mxu0 0.0
        %167 = vmatprep.subr.mxu0 0.0
        %168 = vmatpush1.msra.mxu0 0.0
        %169 = vmatprep.subr.mxu0 0.0
        %170 = vmatpush1.msra.mxu0 0.0
        %171 = vmatprep.subr.mxu0 0.0
        %172 = vmatpush1.msra.mxu0 0.0
        %173 = vmatprep.subr.mxu0 0.0
        %174 = vmatpush1.msra.mxu0 0.0
        %175 = vmatprep.subr.mxu0 0.0
        %176 = vmatpush1.msra.mxu0 0.0
        %177 = vmatprep.subr.mxu0 0.0
        %178 = vmatpush1.msra.mxu0 0.0
        %179 = vmatprep.subr.mxu0 0.0
        %180 = vmatpush1.msra.mxu0 0.0
        %181 = vmatprep.subr.mxu0 0.0
        %182 = vmatpush1.msra.mxu0 0.0
        %183 = vmatprep.subr.mxu0 0.0
        %184 = vmatpush1.msra.mxu0 0.0
        %185 = vmatprep.subr.mxu0 0.0
        %186 = vmatpush1.msra.mxu0 0.0
        %187 = vmatprep.subr.mxu0 0.0
        %188 = vmatpush1.msra.mxu0 0.0
        %189 = vmatprep.subr.mxu0 0.0
        %190 = vmatpush1.msra.mxu0 0.0
        %191 = vmatprep.subr.mxu0 0.0
        %192 = vmatpush1.msra.mxu0 0.0
        %193 = vmatprep.subr.mxu0 0.0
        %194 = vmatpush1.msra.mxu0 0.0
        %195 = vmatprep.subr.mxu0 0.0
        %196 = vmatpush1.msra.mxu0 0.0
        %197 = vmatprep.subr.mxu0 0.0
        %198 = vmatpush1.msra.mxu0 0.0
        %199 = vmatprep.subr.mxu0 0.0
        %200 = vmatpush1.msra.mxu0 0.0
        %201 = vmatprep.subr.mxu0 0.0
        %202 = vmatpush1.msra.mxu0 0.0
        %203 = vmatprep.subr.mxu0 0.0
        %204 = vmatpush1.msra.mxu0 0.0
        %205 = vmatprep.subr.mxu0 0.0
        %206 = vmatpush1.msra.mxu0 0.0
        %207 = vmatprep.subr.mxu0 0.0
        %208 = vmatpush1.msra.mxu0 0.0
        %209 = vmatprep.subr.mxu0 0.0
        %210 = vmatpush1.msra.mxu0 0.0
        %211 = vmatprep.mubr.f32.mxu0 0.0
        %212 = vmatmul.mubr.f32.gmra.mrb[0].mxu0 %v145
        %v213 = vpop.f32.mrb[0].mxu0
        %v214 = vadd.f32 0.0, %v213
        %v215 = vpop.f32.mrb[0].mxu0
        %216 = vdwg.mxu0
        %v218 = vcombine.high %v214, %v214
        %v220 = vunpack.c.l.s4 1966171168
        %v221 = vunpack.c.0.s8 %v220
        %v222 = vlaneseq
        %v223 = vshrl.u32 %v222, 7
        %v224 = vsub.s32 %v221, %v223
        %v225 = vrot.slane %v214, %v224
        %v227 = vunpack.c.l.s4 1966171168
        %v228 = vunpack.c.0.s8 %v227
        %v229 = vlaneseq
        %v230 = vshrl.u32 %v229, 7
        %v231 = vsub.s32 %v228, %v230
        %v232 = vrot.slane %v218, %v231
        %v233 = vcombine.high %v225, %v225
        %v234 = vcombine.high %v232, %v232
        %v236 = vunpack.c.l.s4 1966171168
        %v237 = vunpack.c.0.s8 %v236
        %v238 = vlaneseq
        %v239 = vshrl.u32 %v238, 7
        %v240 = vsub.s32 %v237, %v239
        %v241 = vrot.slane %v225, %v240
        %v243 = vunpack.c.l.s4 1966171168
        %v244 = vunpack.c.0.s8 %v243
        %v245 = vlaneseq
        %v246 = vshrl.u32 %v245, 7
        %v247 = vsub.s32 %v244, %v246
        %v248 = vrot.slane %v232, %v247
        %v250 = vunpack.c.l.s4 1966171168
        %v251 = vunpack.c.0.s8 %v250
        %v252 = vlaneseq
        %v253 = vshrl.u32 %v252, 7
        %v254 = vsub.s32 %v251, %v253
        %v255 = vrot.slane %v233, %v254
        %v257 = vunpack.c.l.s4 1966171168
        %v258 = vunpack.c.0.s8 %v257
        %v259 = vlaneseq
        %v260 = vshrl.u32 %v259, 7
        %v261 = vsub.s32 %v258, %v260
        %v262 = vrot.slane %v234, %v261
        %v263 = vcombine.high %v241, %v241
        %v264 = vcombine.high %v248, %v248
        %v265 = vcombine.high %v255, %v255
        %v266 = vcombine.high %v262, %v262
        %v267 = vlaneseq
        %v268 = vshrl.u32 %v267, 7
        %v269 = vsub.s32 0, %v268
        %v270 = vrot.slane %v241, %v269
        %v271 = vlaneseq
        %v272 = vshrl.u32 %v271, 7
        %v273 = vsub.s32 0, %v272
        %v274 = vrot.slane %v255, %v273
        %v275 = vlaneseq
        %v276 = vshrl.u32 %v275, 7
        %v277 = vsub.s32 0, %v276
        %v278 = vrot.slane %v263, %v277
        %v279 = vlaneseq
        %v280 = vshrl.u32 %v279, 7
        %v281 = vsub.s32 0, %v280
        %v282 = vrot.slane %v265, %v281
        %v283 = vlaneseq
        %v284 = vshrl.u32 %v283, 7
        %v285 = vsub.s32 0, %v284
        %v286 = vrot.slane %v248, %v285
        %v287 = vlaneseq
        %v288 = vshrl.u32 %v287, 7
        %v289 = vsub.s32 0, %v288
        %v290 = vrot.slane %v262, %v289
        %v291 = vlaneseq
        %v292 = vshrl.u32 %v291, 7
        %v293 = vsub.s32 0, %v292
        %v294 = vrot.slane %v264, %v293
        %v295 = vlaneseq
        %v296 = vshrl.u32 %v295, 7
        %v297 = vsub.s32 0, %v296
        %v298 = vrot.slane %v266, %v297
        %v307 = vsub.f32 %v270, %v214
        %v308 = vsub.f32 %v274, %v214
        %v309 = vsub.f32 %v278, %v214
        %v310 = vsub.f32 %v282, %v214
        %v311 = vsub.f32 %v286, %v214
        %v312 = vsub.f32 %v290, %v214
        %v313 = vsub.f32 %v294, %v214
        %v314 = vsub.f32 %v298, %v214
        %v315 = vmul.f32 %v307, %v307
        %v316 = vmul.f32 %v308, %v308
        %v317 = vmul.f32 %v309, %v309
        %v318 = vmul.f32 %v310, %v310
        %v319 = vmul.f32 %v311, %v311
        %v320 = vmul.f32 %v312, %v312
        %v321 = vmul.f32 %v313, %v313
        %v322 = vmul.f32 %v314, %v314
        %vm323 = vcmask 130048
        %v324 = vsel %vm323, %v315, 0.0
        %325 = vadd.xlane.f32.xlu0 %v324
        %v326 = vpop.xlane.xlu0 %325
        %v327 = vsel %vm323, %v316, 0.0
        %328 = vadd.xlane.f32.xlu0 %v327
        %v329 = vpop.xlane.xlu0 %328
        %v330 = vsel %vm323, %v317, 0.0
        %331 = vadd.xlane.f32.xlu0 %v330
        %v332 = vpop.xlane.xlu0 %331
        %v333 = vsel %vm323, %v318, 0.0
        %334 = vadd.xlane.f32.xlu0 %v333
        %v335 = vpop.xlane.xlu0 %334
        %v336 = vsel %vm323, %v319, 0.0
        %337 = vadd.xlane.f32.xlu0 %v336
        %v338 = vpop.xlane.xlu0 %337
        %v339 = vsel %vm323, %v320, 0.0
        %340 = vadd.xlane.f32.xlu0 %v339
        %v341 = vpop.xlane.xlu0 %340
        %v342 = vsel %vm323, %v321, 0.0
        %343 = vadd.xlane.f32.xlu0 %v342
        %v344 = vpop.xlane.xlu0 %343
        %v345 = vsel %vm323, %v322, 0.0
        %346 = vadd.xlane.f32.xlu0 %v345
        %v347 = vpop.xlane.xlu0 %346
        %v356 = vlaneseq
        %v357 = vand.u32 %v356, 127
        %v358 = vlaneseq
        %v359 = vshrl.u32 %v358, 7
        %v360 = vsub.s32 %v357, %v359
        %v361 = vrot.slane %v326, %v360
        %v362 = vlaneseq
        %v363 = vshrl.u32 %v362, 7
        %v364 = vsub.s32 %v357, %v363
        %v365 = vrot.slane %v329, %v364
        %v366 = vlaneseq
        %v367 = vshrl.u32 %v366, 7
        %v368 = vsub.s32 %v357, %v367
        %v369 = vrot.slane %v332, %v368
        %v370 = vlaneseq
        %v371 = vshrl.u32 %v370, 7
        %v372 = vsub.s32 %v357, %v371
        %v373 = vrot.slane %v335, %v372
        %v374 = vlaneseq
        %v375 = vshrl.u32 %v374, 7
        %v376 = vsub.s32 %v357, %v375
        %v377 = vrot.slane %v338, %v376
        %v378 = vlaneseq
        %v379 = vshrl.u32 %v378, 7
        %v380 = vsub.s32 %v357, %v379
        %v381 = vrot.slane %v341, %v380
        %v382 = vlaneseq
        %v383 = vshrl.u32 %v382, 7
        %v384 = vsub.s32 %v357, %v383
        %v385 = vrot.slane %v344, %v384
        %v386 = vlaneseq
        %v387 = vshrl.u32 %v386, 7
        %v388 = vsub.s32 %v357, %v387
        %v389 = vrot.slane %v347, %v388
        %vm390 = vcmask 1041409
        %v391 = vsel %vm390, %v365, %v361
        %vm392 = vcmask 1042434
        %v393 = vsel %vm392, %v369, %v391
        %vm394 = vcmask 1043459
        %v395 = vsel %vm394, %v373, %v393
        %vm396 = vcmask 1044484
        %v397 = vsel %vm396, %v377, %v395
        %vm398 = vcmask 1045509
        %v399 = vsel %vm398, %v381, %v397
        %vm400 = vcmask 1046534
        %v401 = vsel %vm400, %v385, %v399
        %vm402 = vcmask 1047559
        %v403 = vsel %vm402, %v389, %v401
        %v405 = vcombine.high %v403, 0.0
        %v407 = vunpack.c.l.s4 1983009808
        %v408 = vunpack.c.0.s8 %v407
        %v409 = vlaneseq
        %v410 = vshrl.u32 %v409, 7
        %v411 = vsub.s32 %v408, %v410
        %v412 = vrot.slane %v403, %v411
        %v414 = vunpack.c.l.s4 1983009808
        %v415 = vunpack.c.0.s8 %v414
        %v416 = vlaneseq
        %v417 = vshrl.u32 %v416, 7
        %v418 = vsub.s32 %v415, %v417
        %v419 = vrot.slane %v405, %v418
        %v420 = vcombine.high %v412, 0.0
        %v422 = vunpack.c.l.s4 1934713408
        %v423 = vunpack.c.0.s8 %v422
        %v424 = vlaneseq
        %v425 = vshrl.u32 %v424, 7
        %v426 = vsub.s32 %v423, %v425
        %v427 = vrot.slane %v412, %v426
        %v429 = vunpack.c.l.s4 1934713408
        %v430 = vunpack.c.0.s8 %v429
        %v431 = vlaneseq
        %v432 = vshrl.u32 %v431, 7
        %v433 = vsub.s32 %v430, %v432
        %v434 = vrot.slane %v420, %v433
        %v435 = vcombine.high %v419, 0.0
        %v437 = vunpack.c.l.s4 1934713408
        %v438 = vunpack.c.0.s8 %v437
        %v439 = vlaneseq
        %v440 = vshrl.u32 %v439, 7
        %v441 = vsub.s32 %v438, %v440
        %v442 = vrot.slane %v419, %v441
        %v444 = vunpack.c.l.s4 1934713408
        %v445 = vunpack.c.0.s8 %v444
        %v446 = vlaneseq
        %v447 = vshrl.u32 %v446, 7
        %v448 = vsub.s32 %v445, %v447
        %v449 = vrot.slane %v435, %v448
        %v450 = vcombine.high %v427, 0.0
        %v451 = vcombine.high %v434, 0.0
        %v452 = vcombine.high %v442, 0.0
        %v453 = vcombine.high %v449, 0.0
        %455 = vrot.lane.b32.xlu0 %v450, 8
        %v456 = vpop.permute.xlu0 %455
        %459 = vrot.lane.b32.xlu0 %v434, 16
        %v460 = vpop.permute.xlu0 %459
        %463 = vrot.lane.b32.xlu0 %v451, 24
        %v464 = vpop.permute.xlu0 %463
        %467 = vrot.lane.b32.xlu0 %v442, 32
        %v468 = vpop.permute.xlu0 %467
        %471 = vrot.lane.b32.xlu0 %v452, 40
        %v472 = vpop.permute.xlu0 %471
        %475 = vrot.lane.b32.xlu0 %v449, 48
        %v476 = vpop.permute.xlu0 %475
        %479 = vrot.lane.b32.xlu0 %v453, 56
        %v480 = vpop.permute.xlu0 %479
        %vm482 = vcmask 64512
        %v483 = vsel %vm482, %v427, %v456
        %v484 = vsel %vm323, %v483, %v460
        %vm485 = vcmask 195584
        %v486 = vsel %vm485, %v484, %v464
        %v487 = vsel %vm143, %v486, %v468
        %vm488 = vcmask 326656
        %v489 = vsel %vm488, %v487, %v472
        %vm490 = vcmask 392192
        %v491 = vsel %vm490, %v489, %v476
        %vm492 = vcmask 457728
        %v493 = vsel %vm492, %v491, %v480
        %vm494 = vcmask 516096
        %495 = vst.msk [vmem:[%s133] sm:$0x1] %vm494, %v493
        %s496 = sand.u32 %s71, 1
        %s497 = scalar_lea.sflag [#allocation3], %s496
        %s498 = sand.u32 %s71, 1
        %s499 = scalar_lea.vmem [#allocation2], %s498
        // Predicated region
        $region29: #{tpu_custom_call.1} parent=27 // pred_check
          %p500 = pneg %p81
        $region30: #{tpu_custom_call.1} parent=27 // pred_check_branch
          %502 = sbr.rel (%p500) target = $region32
        $region31: #{tpu_custom_call.1} parent=27 // pred_region
          %s504 = ssub.s32 16, 16
          %505 = vsyncadd %s497, %s504
          %s506 = smul.addr %s16, 16
          %s507 = scalar_lea.hbm %s2, %s506
          %s509 = sshll.u32 %s499, 4
          %s510 = int_to_ptr.vmem [resolvable:$true] %s509
          %512 = dma.vmem_to_hbm [thread:$0]  %s510, 16, %s507, %s497
        $region32: #{tpu_custom_call.1} parent=27 // pred_fallthru
          _
      $region28: #{tpu_custom_call.1} parent=5 // pred_fallthru
        _
      %p513 = scmp.le.s32.totalorder 2, %s11
      // Predicated region
      $region33: #{tpu_custom_call.1} parent=5 // pred_check
        %p514 = pneg %p513
      $region34: #{tpu_custom_call.1} parent=5 // pred_check_branch
        %516 = sbr.rel (%p514) target = $region36
      $region35: #{tpu_custom_call.1} parent=5 // pred_region
        %s517 = ssub.s32 %s11, 2
        // Predicated region
        $region37: #{tpu_custom_call.1} parent=35 // pred_check
          %p518 = pneg %p87
        $region38: #{tpu_custom_call.1} parent=35 // pred_check_branch
          %520 = sbr.rel (%p518) target = $region40
        $region39: #{tpu_custom_call.1} parent=35 // pred_region
          %s521 = sand.u32 %s72, 1
          %s522 = scalar_lea.sflag [#allocation3], %s521
          %s523 = sand.u32 %s72, 1
          %s524 = scalar_lea.vmem [#allocation2], %s523
          %525 = dma.done %s522, 16
        $region40: #{tpu_custom_call.1} parent=35 // pred_fallthru
          _
      $region36: #{tpu_custom_call.1} parent=5 // pred_fallthru
        _
    $region6: #{tpu_custom_call.1} parent=1 // loop_footer
      %s15 = sadd.s32 1, %s11
    $region7: #{tpu_custom_call.1} parent=1 // loop_footer_branch
      %10 = sbr.rel target = $region3
    $region8: #{tpu_custom_call.1} parent=1 // loop_exit
      _
    %526 = vsyncpa [#allocation3], 1
    %s527 = scalar_lea.sflag [#allocation3], 1
    %528 = vsyncpa %s527, 1

</llo_original>
